<compile_context>
chip_gen: v7x
topology: tpu7x:2x2x1
jax: 0.10.0
libtpu: 0.0.40
codegen_flags: <defaults>
</compile_context>

<pallas_src>
import functools

import jax
import jax.numpy as jnp
from jax import lax
from jax.experimental import pallas as pl
from jax.experimental.pallas import tpu as pltpu


# --------------------------------- kernel -----------------------------------

def _graph_constructor_kernel(*refs, alpha, dim, gather):
    if gather:
        idx_ref, d_ref, emb_ref, wblk_ref, b_ref, adj_ref = refs
    else:
        d_ref, emb_ref, wblk_ref, b_ref, adj_ref = refs
        idx_ref = None

    n = adj_ref.shape[0]
    nnodes = emb_ref.shape[0]

    # -- embedding gather: one-hot(idx) @ packed_table (single bf16 MXU pass) -
    if gather:
        idx = idx_ref[...]                                      # [N, 1] int32
        col = lax.broadcasted_iota(jnp.int32, (n, nnodes), 1)   # [N, nnodes]
        onehot = (col == idx).astype(jnp.bfloat16)              # 0/1 exact
        nv = jnp.dot(onehot, emb_ref[...],
                     preferred_element_type=jnp.float32)        # [N, 2*dim] f32
    else:
        # fast path: idx is arange(nnodes) -> read the table directly
        nv = emb_ref[...].astype(jnp.float32)                   # [N, 2*dim] f32

    # -- fused lin1/lin2: block-diag weight, packed bias, one tanh (f32) ------
    # nv holds bf16-representable values, so the cast back to bf16 is exact.
    h = jnp.dot(nv.astype(jnp.bfloat16), wblk_ref[...],
                preferred_element_type=jnp.float32) + b_ref[...]
    h = jnp.tanh(alpha * h)                                     # [N, 2*dim] f32

    nv1 = h[:, :dim].astype(jnp.bfloat16)                       # [N, dim] bf16
    nv2 = h[:, dim:].astype(jnp.bfloat16)                       # [N, dim] bf16

    # -- a = nv1 @ nv2^T - nv2 @ nv1^T, with nv2@nv1^T == (nv1@nv2^T)^T -------
    dn = (((1,), (1,)), ((), ()))                 # contract last axes, no .T
    m12 = lax.dot_general(nv1, nv2, dn, preferred_element_type=jnp.float32)
    a = m12 - m12.T                               # XLU transpose, MXU-free

    # -- adj = sigmoid(alpha*a) via tanh (EUP slot, no exp overflow) ----------
    adj = 0.5 * (jnp.tanh(0.5 * alpha * a) + 1.0)
    d = d_ref[0, 0]
    adj_ref[...] = jnp.where(adj < d, 0.0, adj)


# -------------------------------- wrapper ------------------------------------

def graph_constructor_forward(idx, d, params, *, alpha=3.0):
    """adj = GraphConstructor.forward(idx, d) as one fused Pallas kernel.

    idx=None means idx == arange(nnodes): the in-kernel one-hot gather is
    skipped and the packed embedding table is read directly.
    """
    emb = params["emb_packed"]          # [nnodes, 2*dim] bf16
    wblk = params["w_block"]            # [2*dim, 2*dim] bf16 (block diagonal)
    b = params["b_packed"]              # [1, 2*dim]     f32
    nnodes = emb.shape[0]
    dim = emb.shape[1] // 2

    gather = idx is not None
    n = idx.shape[0] if gather else nnodes

    d2d = jnp.asarray(d, jnp.float32).reshape(1, 1)

    vmem = pl.BlockSpec(memory_space=pltpu.MemorySpace.VMEM)
    smem = pl.BlockSpec(memory_space=pltpu.MemorySpace.SMEM)

    kernel = functools.partial(_graph_constructor_kernel,
                               alpha=float(alpha), dim=dim, gather=gather)

    if gather:
        args = (idx.astype(jnp.int32).reshape(n, 1), d2d, emb, wblk, b)
        in_specs = [vmem, smem, vmem, vmem, vmem]
    else:
        args = (d2d, emb, wblk, b)
        in_specs = [smem, vmem, vmem, vmem]

    return pl.pallas_call(
        kernel,
        out_shape=jax.ShapeDtypeStruct((n, n), jnp.float32),
        in_specs=in_specs,
        out_specs=vmem,
        compiler_params=pltpu.CompilerParams(
            vmem_limit_bytes=32 * 1024 * 1024),
    )(*args)


# --------------------------- parameter construction --------------------------

def init_graph_constructor_params(key, nnodes, dim):
    ks = jax.random.split(key, 6)
    s = 0.1
    emb1 = jax.random.normal(ks[0], (nnodes, dim), jnp.float32)
    emb2 = jax.random.normal(ks[1], (nnodes, dim), jnp.float32)
    # nn.Linear weights stored pre-transposed as [in, out]: y = x @ W + b
    w1 = jax.random.normal(ks[2], (dim, dim), jnp.float32) * s
    b1 = jax.random.normal(ks[3], (dim,), jnp.float32) * s
    w2 = jax.random.normal(ks[4], (dim, dim), jnp.float32) * s
    b2 = jax.random.normal(ks[5], (dim,), jnp.float32) * s

    # Packed layouts (review items 2-4): one gather matmul, one fused linear,
    # bf16 MXU operands.
    emb_packed = jnp.concatenate([emb1, emb2], axis=1).astype(jnp.bfloat16)
    w_block = jnp.zeros((2 * dim, 2 * dim), jnp.float32)
    w_block = w_block.at[:dim, :dim].set(w1).at[dim:, dim:].set(w2)
    w_block = w_block.astype(jnp.bfloat16)
    b_packed = jnp.concatenate([b1, b2]).reshape(1, 2 * dim)

    return {"emb_packed": emb_packed, "w_block": w_block, "b_packed": b_packed}


# ------------------------------ pure-JAX reference ---------------------------

def graph_constructor_reference(idx, d, params, *, alpha=3.0):
    """Quantization-faithful reference (same bf16 operand casts as the kernel)."""
    emb = params["emb_packed"].astype(jnp.float32)
    wblk = params["w_block"].astype(jnp.float32)
    dim = emb.shape[1] // 2

    nv = emb[idx] if idx is not None else emb
    h = jnp.tanh(alpha * (nv @ wblk + params["b_packed"]))
    nv1 = h[:, :dim].astype(jnp.bfloat16).astype(jnp.float32)
    nv2 = h[:, dim:].astype(jnp.bfloat16).astype(jnp.float32)
    m12 = nv1 @ nv2.T
    a = m12 - m12.T
    adj_raw = jax.nn.sigmoid(alpha * a)
    return jnp.where(adj_raw < d, 0.0, adj_raw), adj_raw


# ----------------------------------- main ------------------------------------

if __name__ == "__main__":
    NNODES, DIM = 128, 32            # 128 nodes -> lane-dense [128,128] output
    ALPHA, D_THRESH = 3.0, 0.55

    root = jax.random.PRNGKey(0)
    k_params, k_idx = jax.random.split(root)

    params = init_graph_constructor_params(k_params, NNODES, DIM)
    idx = jax.random.permutation(k_idx, NNODES).astype(jnp.int32)

    # --- gather path (shuffled node ids) ---
    adj = graph_constructor_forward(idx, D_THRESH, params, alpha=ALPHA)
    adj = jax.block_until_ready(adj)

    ref, ref_raw = graph_constructor_reference(idx, D_THRESH, params, alpha=ALPHA)

    assert adj.shape == (NNODES, NNODES), adj.shape
    assert bool(jnp.all(jnp.isfinite(adj)))
    # thresholding semantics: every entry is either exactly 0 or >= d
    assert bool(jnp.all((adj == 0.0) | (adj >= D_THRESH - 1e-6)))
    # match the reference; exempt entries at the threshold boundary where tiny
    # fp differences could flip the strict '<' compare
    close = jnp.abs(adj - ref) <= 2e-4
    boundary = jnp.abs(ref_raw - D_THRESH) <= 2e-4
    assert bool(jnp.all(close | boundary))

    # --- identity-idx fast path (no in-kernel gather) ---
    adj_id = graph_constructor_forward(None, D_THRESH, params, alpha=ALPHA)
    adj_id = jax.block_until_ready(adj_id)
    ref_id, ref_id_raw = graph_constructor_reference(None, D_THRESH, params,
                                                     alpha=ALPHA)
    close_id = jnp.abs(adj_id - ref_id) <= 2e-4
    boundary_id = jnp.abs(ref_id_raw - D_THRESH) <= 2e-4
    assert bool(jnp.all(close_id | boundary_id))

    print("KERNEL_OK")
</pallas_src>

<mosaic_0001>
module attributes {stable_mosaic.version = 11 : i64} {
  func.func @_graph_constructor_kernel(%arg0: memref<128x1xi32, #tpu.memory_space<vmem>>, %arg1: memref<1x1xf32, #tpu.memory_space<smem>>, %arg2: memref<128x64xbf16, #tpu.memory_space<vmem>>, %arg3: memref<64x64xbf16, #tpu.memory_space<vmem>>, %arg4: memref<1x64xf32, #tpu.memory_space<vmem>>, %arg5: memref<128x128xf32, #tpu.memory_space<vmem>>) attributes {dimension_semantics = [], scalar_prefetch = 0 : i64, scratch_operands = 0 : i64, tpu.core_type = #tpu.core_type<tc>} {
    %c0 = arith.constant 0 : index
    %c0_0 = arith.constant 0 : index
    %0 = vector.load %arg0[%c0, %c0_0] : memref<128x1xi32, #tpu.memory_space<vmem>>, vector<128x1xi32>
    %1 = tpu.iota {dimensions = array<i32: 1>} : vector<128x128xi32>
    %2 = vector.broadcast %0 : vector<128x1xi32> to vector<128x128xi32>
    %3 = arith.cmpi eq, %1, %2 : vector<128x128xi32>
    %4 = arith.extui %3 : vector<128x128xi1> to vector<128x128xi32>
    %5 = arith.sitofp %4 : vector<128x128xi32> to vector<128x128xf32>
    %6 = arith.truncf %5 : vector<128x128xf32> to vector<128x128xbf16>
    %c0_1 = arith.constant 0 : index
    %c0_2 = arith.constant 0 : index
    %7 = vector.load %arg2[%c0_1, %c0_2] : memref<128x64xbf16, #tpu.memory_space<vmem>>, vector<128x64xbf16>
    %cst = arith.constant dense<0.000000e+00> : vector<128x64xf32>
    %8 = tpu.matmul %6, %7, %cst {dimension_numbers = #tpu.dot_dimension_numbers<[1], [0], [0], [1], [0, 0, 1, 1], [], []>} : vector<128x128xbf16>, vector<128x64xbf16>, vector<128x64xf32> -> vector<128x64xf32>
    %9 = arith.truncf %8 : vector<128x64xf32> to vector<128x64xbf16>
    %c0_3 = arith.constant 0 : index
    %c0_4 = arith.constant 0 : index
    %10 = vector.load %arg3[%c0_3, %c0_4] : memref<64x64xbf16, #tpu.memory_space<vmem>>, vector<64x64xbf16>
    %cst_5 = arith.constant dense<0.000000e+00> : vector<128x64xf32>
    %11 = tpu.matmul %9, %10, %cst_5 {dimension_numbers = #tpu.dot_dimension_numbers<[1], [0], [0], [1], [0, 0, 1, 1], [], []>} : vector<128x64xbf16>, vector<64x64xbf16>, vector<128x64xf32> -> vector<128x64xf32>
    %c0_6 = arith.constant 0 : index
    %c0_7 = arith.constant 0 : index
    %12 = vector.load %arg4[%c0_6, %c0_7] : memref<1x64xf32, #tpu.memory_space<vmem>>, vector<1x64xf32>
    %13 = vector.broadcast %12 : vector<1x64xf32> to vector<128x64xf32>
    %14 = arith.addf %11, %13 : vector<128x64xf32>
    %cst_8 = arith.constant 3.000000e+00 : f32
    %15 = vector.broadcast %cst_8 : f32 to vector<128x64xf32>
    %16 = arith.mulf %15, %14 : vector<128x64xf32>
    %17 = math.tanh %16 : vector<128x64xf32>
    %18 = vector.extract_strided_slice %17 {offsets = [0, 0], sizes = [128, 32], strides = [1, 1]} : vector<128x64xf32> to vector<128x32xf32>
    %19 = arith.truncf %18 : vector<128x32xf32> to vector<128x32xbf16>
    %20 = vector.extract_strided_slice %17 {offsets = [0, 32], sizes = [128, 32], strides = [1, 1]} : vector<128x64xf32> to vector<128x32xf32>
    %21 = arith.truncf %20 : vector<128x32xf32> to vector<128x32xbf16>
    %cst_9 = arith.constant dense<0.000000e+00> : vector<128x128xf32>
    %22 = tpu.matmul %19, %21, %cst_9 {dimension_numbers = #tpu.dot_dimension_numbers<[1], [1], [0], [0], [0, 0, 1, 0], [], []>} : vector<128x32xbf16>, vector<128x32xbf16>, vector<128x128xf32> -> vector<128x128xf32>
    %23 = tpu.transpose %22, [1, 0] : vector<128x128xf32> -> vector<128x128xf32>
    %24 = arith.subf %22, %23 : vector<128x128xf32>
    %cst_10 = arith.constant 1.500000e+00 : f32
    %25 = vector.broadcast %cst_10 : f32 to vector<128x128xf32>
    %26 = arith.mulf %25, %24 : vector<128x128xf32>
    %27 = math.tanh %26 : vector<128x128xf32>
    %cst_11 = arith.constant 1.000000e+00 : f32
    %28 = vector.broadcast %cst_11 : f32 to vector<128x128xf32>
    %29 = arith.addf %27, %28 : vector<128x128xf32>
    %cst_12 = arith.constant 5.000000e-01 : f32
    %30 = vector.broadcast %cst_12 : f32 to vector<128x128xf32>
    %31 = arith.mulf %30, %29 : vector<128x128xf32>
    %c0_13 = arith.constant 0 : index
    %c0_14 = arith.constant 0 : index
    %32 = memref.load %arg1[%c0_13, %c0_14] : memref<1x1xf32, #tpu.memory_space<smem>>
    %33 = vector.broadcast %32 : f32 to vector<128x128xf32>
    %34 = arith.cmpf olt, %31, %33 : vector<128x128xf32>
    %cst_15 = arith.constant 0.000000e+00 : f32
    %35 = vector.broadcast %cst_15 : f32 to vector<128x128xf32>
    %36 = arith.select %34, %35, %31 : vector<128x128xi1>, vector<128x128xf32>
    %c0_16 = arith.constant 0 : index
    %c0_17 = arith.constant 0 : index
    %37 = vector.load %arg5[%c0_16, %c0_17] : memref<128x128xf32, #tpu.memory_space<vmem>>, vector<128x128xf32>
    tpu.vector_store %arg5[%c0_16, %c0_17], %36 {strides = array<i32>} : memref<128x128xf32, #tpu.memory_space<vmem>>, vector<128x128xf32>,
    return
  }
}

</mosaic_0001>

<llo_original>
// kernel: tpu_custom_call.1
$region0: #{tpu_custom_call.1}
  #allocation0 [shape = 'u32[]', space=smem, size = 0x4, offset = 0x4, fixed_abs, tag = 'smem constant byte address 0x4 - core index']
  #allocation1 [shape = 'u32[144,128]{1,0:T(1,128)}', space=vmem, size = 0x12000, scoped, tag = 'internal scratch']
  #allocation2 [shape = 'f32[1,1]{1,0:T(1,128)S(6)}', space=smem, size = 0x200, scoped, tag = 'scoped memory for tpu_custom_call.1']
  %s0 = inlined_call_operand.vmem [shape: s32[128,1], index: 0, kind: input, shape index: {}]
  %s1 = inlined_call_operand.<no memory space> [shape: f32[1,1], index: 1, kind: input, shape index: {}]
  %s2 = inlined_call_operand.vmem [shape: bf16[128,64], index: 2, kind: input, shape index: {}]
  %s3 = inlined_call_operand.vmem [shape: bf16[64,64], index: 3, kind: input, shape index: {}]
  %s4 = inlined_call_operand.vmem [shape: f32[1,64], index: 4, kind: input, shape index: {}]
  %s5 = inlined_call_operand.hbm [shape: f32[128,128], index: 5, kind: output, shape index: {}]
  %s6 = sld [smem:[#allocation0]]
  $region30: #{tpu_custom_call.1} parent=0
    _
  %s8 = ssub.s32 1, %s6
  %s9 = scalar_select 0, %s8, %s6
  %10 = sst [smem:[#allocation2]] %s1
  $region1: #{tpu_custom_call.1} parent=0
    #allocation3 [shape = 'u8[65536]{0}', space=vmem, size = 0x10000, scoped, tag = 'output window, operand 0, single buffered']
    #allocation4 [shape = 's32[1]{0}', space=sflag, size = 0x4, scoped, tag = 'scoped memory for tpu_custom_call.1']
    %11 = vsyncpa [#allocation4], 0
    // Predicated region
    $region2: #{tpu_custom_call.1} parent=1 // pred_check
      _
    $region3: #{tpu_custom_call.1} parent=1 // pred_check_branch
      %13 = sbr.rel (0) target = $region5
    $region4: #{tpu_custom_call.1} parent=1 // pred_region
      _
    $region5: #{tpu_custom_call.1} parent=1 // pred_fallthru
      _
    // Predicated region
    $region6: #{tpu_custom_call.1} parent=1 // pred_check
      _
    $region7: #{tpu_custom_call.1} parent=1 // pred_check_branch
      %15 = sbr.rel (0) target = $region9
    $region8: #{tpu_custom_call.1} parent=1 // pred_region
      _
    $region9: #{tpu_custom_call.1} parent=1 // pred_fallthru
      _
    // Predicated region
    $region10: #{tpu_custom_call.1} parent=1 // pred_check
      _
    $region11: #{tpu_custom_call.1} parent=1 // pred_check_branch
      %17 = sbr.rel (0) target = $region13
    $region12: #{tpu_custom_call.1} parent=1 // pred_region
      _
    $region13: #{tpu_custom_call.1} parent=1 // pred_fallthru
      _
    // Predicated region
    $region14: #{tpu_custom_call.1} parent=1 // pred_check
      _
    $region15: #{tpu_custom_call.1} parent=1 // pred_check_branch
      %19 = sbr.rel (0) target = $region17
    $region16: #{tpu_custom_call.1} parent=1 // pred_region
      _
    $region17: #{tpu_custom_call.1} parent=1 // pred_fallthru
      _
    // Predicated region
    $region18: #{tpu_custom_call.1} parent=1 // pred_check
      _
    $region19: #{tpu_custom_call.1} parent=1 // pred_check_branch
      %21 = sbr.rel (0) target = $region21
    $region20: #{tpu_custom_call.1} parent=1 // pred_region
      _
    $region21: #{tpu_custom_call.1} parent=1 // pred_fallthru
      _
    %v23 = vld [vmem:[%s0] sm:$0xff]
    %v24 = vld [vmem:[%s0 + $0x8] sm:$0xff]
    %v25 = vld [vmem:[%s0 + $0x10] sm:$0xff]
    %v26 = vld [vmem:[%s0 + $0x18] sm:$0xff]
    %v27 = vld [vmem:[%s0 + $0x20] sm:$0xff]
    %v28 = vld [vmem:[%s0 + $0x28] sm:$0xff]
    %v29 = vld [vmem:[%s0 + $0x30] sm:$0xff]
    %v30 = vld [vmem:[%s0 + $0x38] sm:$0xff]
    %v31 = vld [vmem:[%s0 + $0x40] sm:$0xff]
    %v32 = vld [vmem:[%s0 + $0x48] sm:$0xff]
    %v33 = vld [vmem:[%s0 + $0x50] sm:$0xff]
    %v34 = vld [vmem:[%s0 + $0x58] sm:$0xff]
    %v35 = vld [vmem:[%s0 + $0x60] sm:$0xff]
    %v36 = vld [vmem:[%s0 + $0x68] sm:$0xff]
    %v37 = vld [vmem:[%s0 + $0x70] sm:$0xff]
    %v38 = vld [vmem:[%s0 + $0x78] sm:$0xff]
    %v39 = vlaneseq
    %v40 = vand.u32 %v39, 127
    %41 = vset.pattern.permute.xlu0 0
    %42 = vperm.xlu0 %41, %v23
    %v43 = vpop.permute.xlu0 %42
    %44 = vset.pattern.permute.xlu0 0
    %45 = vperm.xlu0 %44, %v24
    %v46 = vpop.permute.xlu0 %45
    %47 = vset.pattern.permute.xlu0 0
    %48 = vperm.xlu0 %47, %v25
    %v49 = vpop.permute.xlu0 %48
    %50 = vset.pattern.permute.xlu0 0
    %51 = vperm.xlu0 %50, %v26
    %v52 = vpop.permute.xlu0 %51
    %53 = vset.pattern.permute.xlu0 0
    %54 = vperm.xlu0 %53, %v27
    %v55 = vpop.permute.xlu0 %54
    %56 = vset.pattern.permute.xlu0 0
    %57 = vperm.xlu0 %56, %v28
    %v58 = vpop.permute.xlu0 %57
    %59 = vset.pattern.permute.xlu0 0
    %60 = vperm.xlu0 %59, %v29
    %v61 = vpop.permute.xlu0 %60
    %62 = vset.pattern.permute.xlu0 0
    %63 = vperm.xlu0 %62, %v30
    %v64 = vpop.permute.xlu0 %63
    %65 = vset.pattern.permute.xlu0 0
    %66 = vperm.xlu0 %65, %v31
    %v67 = vpop.permute.xlu0 %66
    %68 = vset.pattern.permute.xlu0 0
    %69 = vperm.xlu0 %68, %v32
    %v70 = vpop.permute.xlu0 %69
    %71 = vset.pattern.permute.xlu0 0
    %72 = vperm.xlu0 %71, %v33
    %v73 = vpop.permute.xlu0 %72
    %74 = vset.pattern.permute.xlu0 0
    %75 = vperm.xlu0 %74, %v34
    %v76 = vpop.permute.xlu0 %75
    %77 = vset.pattern.permute.xlu0 0
    %78 = vperm.xlu0 %77, %v35
    %v79 = vpop.permute.xlu0 %78
    %80 = vset.pattern.permute.xlu0 0
    %81 = vperm.xlu0 %80, %v36
    %v82 = vpop.permute.xlu0 %81
    %83 = vset.pattern.permute.xlu0 0
    %84 = vperm.xlu0 %83, %v37
    %v85 = vpop.permute.xlu0 %84
    %86 = vset.pattern.permute.xlu0 0
    %87 = vperm.xlu0 %86, %v38
    %v88 = vpop.permute.xlu0 %87
    %vm89 = vcmp.eq.s32.totalorder %v40, %v43
    %vm90 = vcmp.eq.s32.totalorder %v40, %v46
    %vm91 = vcmp.eq.s32.totalorder %v40, %v49
    %vm92 = vcmp.eq.s32.totalorder %v40, %v52
    %vm93 = vcmp.eq.s32.totalorder %v40, %v55
    %vm94 = vcmp.eq.s32.totalorder %v40, %v58
    %vm95 = vcmp.eq.s32.totalorder %v40, %v61
    %vm96 = vcmp.eq.s32.totalorder %v40, %v64
    %vm97 = vcmp.eq.s32.totalorder %v40, %v67
    %vm98 = vcmp.eq.s32.totalorder %v40, %v70
    %vm99 = vcmp.eq.s32.totalorder %v40, %v73
    %vm100 = vcmp.eq.s32.totalorder %v40, %v76
    %vm101 = vcmp.eq.s32.totalorder %v40, %v79
    %vm102 = vcmp.eq.s32.totalorder %v40, %v82
    %vm103 = vcmp.eq.s32.totalorder %v40, %v85
    %vm104 = vcmp.eq.s32.totalorder %v40, %v88
    %v105 = vsel %vm89, 1, 0
    %v106 = vsel %vm90, 1, 0
    %v107 = vsel %vm91, 1, 0
    %v108 = vsel %vm92, 1, 0
    %v109 = vsel %vm93, 1, 0
    %v110 = vsel %vm94, 1, 0
    %v111 = vsel %vm95, 1, 0
    %v112 = vsel %vm96, 1, 0
    %v113 = vsel %vm97, 1, 0
    %v114 = vsel %vm98, 1, 0
    %v115 = vsel %vm99, 1, 0
    %v116 = vsel %vm100, 1, 0
    %v117 = vsel %vm101, 1, 0
    %v118 = vsel %vm102, 1, 0
    %v119 = vsel %vm103, 1, 0
    %v120 = vsel %vm104, 1, 0
    %v121 = vcvt.s32.f32 %v105
    %v122 = vcvt.s32.f32 %v106
    %v123 = vcvt.s32.f32 %v107
    %v124 = vcvt.s32.f32 %v108
    %v125 = vcvt.s32.f32 %v109
    %v126 = vcvt.s32.f32 %v110
    %v127 = vcvt.s32.f32 %v111
    %v128 = vcvt.s32.f32 %v112
    %v129 = vcvt.s32.f32 %v113
    %v130 = vcvt.s32.f32 %v114
    %v131 = vcvt.s32.f32 %v115
    %v132 = vcvt.s32.f32 %v116
    %v133 = vcvt.s32.f32 %v117
    %v134 = vcvt.s32.f32 %v118
    %v135 = vcvt.s32.f32 %v119
    %v136 = vcvt.s32.f32 %v120
    %v137 = vpack.c.bf16 %v122, %v121
    %v138 = vpack.c.bf16 %v124, %v123
    %v139 = vpack.c.bf16 %v126, %v125
    %v140 = vpack.c.bf16 %v128, %v127
    %v141 = vpack.c.bf16 %v130, %v129
    %v142 = vpack.c.bf16 %v132, %v131
    %v143 = vpack.c.bf16 %v134, %v133
    %v144 = vpack.c.bf16 %v136, %v135
    %v145 = vld [vmem:[%s2] sm:$0xf]
    %v146 = vld [vmem:[%s2 + $0x4] sm:$0xf]
    %v147 = vld [vmem:[%s2 + $0x8] sm:$0xf]
    %v148 = vld [vmem:[%s2 + $0xc] sm:$0xf]
    %v149 = vld [vmem:[%s2 + $0x10] sm:$0xf]
    %v150 = vld [vmem:[%s2 + $0x14] sm:$0xf]
    %v151 = vld [vmem:[%s2 + $0x18] sm:$0xf]
    %v152 = vld [vmem:[%s2 + $0x1c] sm:$0xf]
    %v153 = vld [vmem:[%s2 + $0x20] sm:$0xf]
    %v154 = vld [vmem:[%s2 + $0x24] sm:$0xf]
    %v155 = vld [vmem:[%s2 + $0x28] sm:$0xf]
    %v156 = vld [vmem:[%s2 + $0x2c] sm:$0xf]
    %v157 = vld [vmem:[%s2 + $0x30] sm:$0xf]
    %v158 = vld [vmem:[%s2 + $0x34] sm:$0xf]
    %v159 = vld [vmem:[%s2 + $0x38] sm:$0xf]
    %v160 = vld [vmem:[%s2 + $0x3c] sm:$0xf]
    %v177 = vunpack.c.l.b16 %v145
    %v178 = vunpack.c.l.b16 %v146
    %v179 = vunpack.c.l.b16 %v147
    %v180 = vunpack.c.l.b16 %v148
    %v181 = vunpack.c.l.b16 %v149
    %v182 = vunpack.c.l.b16 %v150
    %v183 = vunpack.c.l.b16 %v151
    %v184 = vunpack.c.l.b16 %v152
    %v185 = vunpack.c.l.b16 %v153
    %v186 = vunpack.c.l.b16 %v154
    %v187 = vunpack.c.l.b16 %v155
    %v188 = vunpack.c.l.b16 %v156
    %v189 = vunpack.c.l.b16 %v157
    %v190 = vunpack.c.l.b16 %v158
    %v191 = vunpack.c.l.b16 %v159
    %v192 = vunpack.c.l.b16 %v160
    %v193 = vpack.c.b16 %v178, %v177
    %v194 = vpack.c.b16 %v180, %v179
    %v195 = vpack.c.b16 %v182, %v181
    %v196 = vpack.c.b16 %v184, %v183
    %v197 = vpack.c.b16 %v186, %v185
    %v198 = vpack.c.b16 %v188, %v187
    %v199 = vpack.c.b16 %v190, %v189
    %v200 = vpack.c.b16 %v192, %v191
    %209 = vmatprep.subr.bf16.mxu0 0
    %210 = vmatpush1.bf16.msra.mxu0 %v193
    %211 = vmatprep.subr.bf16.mxu0 0
    %212 = vmatpush1.bf16.msra.mxu0 %v194
    %213 = vmatprep.subr.bf16.mxu0 0
    %214 = vmatpush1.bf16.msra.mxu0 %v195
    %215 = vmatprep.subr.bf16.mxu0 0
    %216 = vmatpush1.bf16.msra.mxu0 %v196
    %217 = vmatprep.subr.bf16.mxu0 0
    %218 = vmatpush1.bf16.msra.mxu0 %v197
    %219 = vmatprep.subr.bf16.mxu0 0
    %220 = vmatpush1.bf16.msra.mxu0 %v198
    %221 = vmatprep.subr.bf16.mxu0 0
    %222 = vmatpush1.bf16.msra.mxu0 %v199
    %223 = vmatprep.subr.bf16.mxu0 0
    %224 = vmatpush1.bf16.msra.mxu0 %v200
    %225 = vmatprep.subr.bf16.mxu0 0
    %226 = vmatpush1.bf16.msra.mxu0 0
    %227 = vmatprep.subr.bf16.mxu0 0
    %228 = vmatpush1.bf16.msra.mxu0 0
    %229 = vmatprep.subr.bf16.mxu0 0
    %230 = vmatpush1.bf16.msra.mxu0 0
    %231 = vmatprep.subr.bf16.mxu0 0
    %232 = vmatpush1.bf16.msra.mxu0 0
    %233 = vmatprep.subr.bf16.mxu0 0
    %234 = vmatpush1.bf16.msra.mxu0 0
    %235 = vmatprep.subr.bf16.mxu0 0
    %236 = vmatpush1.bf16.msra.mxu0 0
    %237 = vmatprep.subr.bf16.mxu0 0
    %238 = vmatpush1.bf16.msra.mxu0 0
    %239 = vmatprep.subr.bf16.mxu0 0
    %240 = vmatpush1.bf16.msra.mxu0 0
    %241 = vmatprep.mubr.bf16.mxu0 0
    %242 = vmatmul.mubr.bf16.gmra.mrb[0].mxu0 %v137
    %v243 = vpop.f32.mrb[0].mxu0
    %v244 = vadd.f32 0.0, %v243
    %v245 = vpop.f32.mrb[0].mxu0
    %v246 = vpop.f32.mrb[0].mxu0
    %v247 = vadd.f32 0.0, %v246
    %v248 = vpop.f32.mrb[0].mxu0
    %249 = vmatprep.mubr.bf16.mxu0 0
    %250 = vmatmul.mubr.bf16.gmra.mrb[0].mxu0 %v138
    %v251 = vpop.f32.mrb[0].mxu0
    %v252 = vadd.f32 0.0, %v251
    %v253 = vpop.f32.mrb[0].mxu0
    %v254 = vpop.f32.mrb[0].mxu0
    %v255 = vadd.f32 0.0, %v254
    %v256 = vpop.f32.mrb[0].mxu0
    %257 = vmatprep.mubr.bf16.mxu0 0
    %258 = vmatmul.mubr.bf16.gmra.mrb[0].mxu0 %v139
    %v259 = vpop.f32.mrb[0].mxu0
    %v260 = vadd.f32 0.0, %v259
    %v261 = vpop.f32.mrb[0].mxu0
    %v262 = vpop.f32.mrb[0].mxu0
    %v263 = vadd.f32 0.0, %v262
    %v264 = vpop.f32.mrb[0].mxu0
    %265 = vmatprep.mubr.bf16.mxu0 0
    %266 = vmatmul.mubr.bf16.gmra.mrb[0].mxu0 %v140
    %v267 = vpop.f32.mrb[0].mxu0
    %v268 = vadd.f32 0.0, %v267
    %v269 = vpop.f32.mrb[0].mxu0
    %v270 = vpop.f32.mrb[0].mxu0
    %v271 = vadd.f32 0.0, %v270
    %v272 = vpop.f32.mrb[0].mxu0
    %273 = vmatprep.mubr.bf16.mxu0 0
    %274 = vmatmul.mubr.bf16.gmra.mrb[0].mxu0 %v141
    %v275 = vpop.f32.mrb[0].mxu0
    %v276 = vadd.f32 0.0, %v275
    %v277 = vpop.f32.mrb[0].mxu0
    %v278 = vpop.f32.mrb[0].mxu0
    %v279 = vadd.f32 0.0, %v278
    %v280 = vpop.f32.mrb[0].mxu0
    %281 = vmatprep.mubr.bf16.mxu0 0
    %282 = vmatmul.mubr.bf16.gmra.mrb[0].mxu0 %v142
    %v283 = vpop.f32.mrb[0].mxu0
    %v284 = vadd.f32 0.0, %v283
    %v285 = vpop.f32.mrb[0].mxu0
    %v286 = vpop.f32.mrb[0].mxu0
    %v287 = vadd.f32 0.0, %v286
    %v288 = vpop.f32.mrb[0].mxu0
    %289 = vmatprep.mubr.bf16.mxu0 0
    %290 = vmatmul.mubr.bf16.gmra.mrb[0].mxu0 %v143
    %v291 = vpop.f32.mrb[0].mxu0
    %v292 = vadd.f32 0.0, %v291
    %v293 = vpop.f32.mrb[0].mxu0
    %v294 = vpop.f32.mrb[0].mxu0
    %v295 = vadd.f32 0.0, %v294
    %v296 = vpop.f32.mrb[0].mxu0
    %297 = vmatprep.mubr.bf16.mxu0 0
    %298 = vmatmul.mubr.bf16.gmra.mrb[0].mxu0 %v144
    %v299 = vpop.f32.mrb[0].mxu0
    %v300 = vadd.f32 0.0, %v299
    %v301 = vpop.f32.mrb[0].mxu0
    %v302 = vpop.f32.mrb[0].mxu0
    %v303 = vadd.f32 0.0, %v302
    %v304 = vpop.f32.mrb[0].mxu0
    %305 = vdwg.mxu0
    %v306 = vpack.c.bf16 %v247, %v244
    %v307 = vpack.c.bf16 %v255, %v252
    %v308 = vpack.c.bf16 %v263, %v260
    %v309 = vpack.c.bf16 %v271, %v268
    %v310 = vpack.c.bf16 %v279, %v276
    %v311 = vpack.c.bf16 %v287, %v284
    %v312 = vpack.c.bf16 %v295, %v292
    %v313 = vpack.c.bf16 %v303, %v300
    %v314 = vld [vmem:[%s3] sm:$0xf]
    %v315 = vld [vmem:[%s3 + $0x4] sm:$0xf]
    %v316 = vld [vmem:[%s3 + $0x8] sm:$0xf]
    %v317 = vld [vmem:[%s3 + $0xc] sm:$0xf]
    %v318 = vld [vmem:[%s3 + $0x10] sm:$0xf]
    %v319 = vld [vmem:[%s3 + $0x14] sm:$0xf]
    %v320 = vld [vmem:[%s3 + $0x18] sm:$0xf]
    %v321 = vld [vmem:[%s3 + $0x1c] sm:$0xf]
    %v322 = vld [vmem:[%s4] sm:$0x1]
    %v324 = vlaneseq
    %v325 = vshrl.u32 %v324, 7
    %v326 = vsub.s32 0, %v325
    %v327 = vrot.slane %v322, %v326
    %v337 = vunpack.c.l.b16 %v314
    %v338 = vunpack.c.l.b16 %v315
    %v339 = vunpack.c.l.b16 %v316
    %v340 = vunpack.c.l.b16 %v317
    %v341 = vunpack.c.l.b16 %v318
    %v342 = vunpack.c.l.b16 %v319
    %v343 = vunpack.c.l.b16 %v320
    %v344 = vunpack.c.l.b16 %v321
    %v345 = vpack.c.b16 %v338, %v337
    %v346 = vpack.c.b16 %v340, %v339
    %v347 = vpack.c.b16 %v342, %v341
    %v348 = vpack.c.b16 %v344, %v343
    %vm353 = vcmask 523264
    %v355 = vsel %vm353, %v306, 0
    %v358 = vsel %vm353, %v307, 0
    %v361 = vsel %vm353, %v308, 0
    %v364 = vsel %vm353, %v309, 0
    %v367 = vsel %vm353, %v310, 0
    %v370 = vsel %vm353, %v311, 0
    %v373 = vsel %vm353, %v312, 0
    %v376 = vsel %vm353, %v313, 0
    %378 = vmatprep.subr.bf16.mxu0 0
    %379 = vmatpush1.bf16.msra.mxu0 %v345
    %380 = vmatprep.subr.bf16.mxu0 0
    %381 = vmatpush1.bf16.msra.mxu0 %v346
    %382 = vmatprep.subr.bf16.mxu0 0
    %383 = vmatpush1.bf16.msra.mxu0 %v347
    %384 = vmatprep.subr.bf16.mxu0 0
    %385 = vmatpush1.bf16.msra.mxu0 %v348
    %386 = vmatprep.subr.bf16.mxu0 0
    %387 = vmatpush1.bf16.msra.mxu0 0
    %388 = vmatprep.subr.bf16.mxu0 0
    %389 = vmatpush1.bf16.msra.mxu0 0
    %390 = vmatprep.subr.bf16.mxu0 0
    %391 = vmatpush1.bf16.msra.mxu0 0
    %392 = vmatprep.subr.bf16.mxu0 0
    %393 = vmatpush1.bf16.msra.mxu0 0
    %394 = vmatprep.subr.bf16.mxu0 0
    %395 = vmatpush1.bf16.msra.mxu0 0
    %396 = vmatprep.subr.bf16.mxu0 0
    %397 = vmatpush1.bf16.msra.mxu0 0
    %398 = vmatprep.subr.bf16.mxu0 0
    %399 = vmatpush1.bf16.msra.mxu0 0
    %400 = vmatprep.subr.bf16.mxu0 0
    %401 = vmatpush1.bf16.msra.mxu0 0
    %402 = vmatprep.subr.bf16.mxu0 0
    %403 = vmatpush1.bf16.msra.mxu0 0
    %404 = vmatprep.subr.bf16.mxu0 0
    %405 = vmatpush1.bf16.msra.mxu0 0
    %406 = vmatprep.subr.bf16.mxu0 0
    %407 = vmatpush1.bf16.msra.mxu0 0
    %408 = vmatprep.subr.bf16.mxu0 0
    %409 = vmatpush1.bf16.msra.mxu0 0
    %410 = vmatprep.mubr.bf16.mxu0 0
    %411 = vmatmul.mubr.bf16.gmra.mrb[0].mxu0 %v355
    %v412 = vpop.f32.mrb[0].mxu0
    %v413 = vadd.f32 %v327, %v412
    %v414 = vpop.f32.mrb[0].mxu0
    %v415 = vpop.f32.mrb[0].mxu0
    %v416 = vadd.f32 %v327, %v415
    %v417 = vpop.f32.mrb[0].mxu0
    %418 = vmatprep.mubr.bf16.mxu0 0
    %419 = vmatmul.mubr.bf16.gmra.mrb[0].mxu0 %v358
    %v420 = vpop.f32.mrb[0].mxu0
    %v421 = vadd.f32 %v327, %v420
    %v422 = vpop.f32.mrb[0].mxu0
    %v423 = vpop.f32.mrb[0].mxu0
    %v424 = vadd.f32 %v327, %v423
    %v425 = vpop.f32.mrb[0].mxu0
    %426 = vmatprep.mubr.bf16.mxu0 0
    %427 = vmatmul.mubr.bf16.gmra.mrb[0].mxu0 %v361
    %v428 = vpop.f32.mrb[0].mxu0
    %v429 = vadd.f32 %v327, %v428
    %v430 = vpop.f32.mrb[0].mxu0
    %v431 = vpop.f32.mrb[0].mxu0
    %v432 = vadd.f32 %v327, %v431
    %v433 = vpop.f32.mrb[0].mxu0
    %434 = vmatprep.mubr.bf16.mxu0 0
    %435 = vmatmul.mubr.bf16.gmra.mrb[0].mxu0 %v364
    %v436 = vpop.f32.mrb[0].mxu0
    %v437 = vadd.f32 %v327, %v436
    %v438 = vpop.f32.mrb[0].mxu0
    %v439 = vpop.f32.mrb[0].mxu0
    %v440 = vadd.f32 %v327, %v439
    %v441 = vpop.f32.mrb[0].mxu0
    %442 = vmatprep.mubr.bf16.mxu0 0
    %443 = vmatmul.mubr.bf16.gmra.mrb[0].mxu0 %v367
    %v444 = vpop.f32.mrb[0].mxu0
    %v445 = vadd.f32 %v327, %v444
    %v446 = vpop.f32.mrb[0].mxu0
    %v447 = vpop.f32.mrb[0].mxu0
    %v448 = vadd.f32 %v327, %v447
    %v449 = vpop.f32.mrb[0].mxu0
    %450 = vmatprep.mubr.bf16.mxu0 0
    %451 = vmatmul.mubr.bf16.gmra.mrb[0].mxu0 %v370
    %v452 = vpop.f32.mrb[0].mxu0
    %v453 = vadd.f32 %v327, %v452
    %v454 = vpop.f32.mrb[0].mxu0
    %v455 = vpop.f32.mrb[0].mxu0
    %v456 = vadd.f32 %v327, %v455
    %v457 = vpop.f32.mrb[0].mxu0
    %458 = vmatprep.mubr.bf16.mxu0 0
    %459 = vmatmul.mubr.bf16.gmra.mrb[0].mxu0 %v373
    %v460 = vpop.f32.mrb[0].mxu0
    %v461 = vadd.f32 %v327, %v460
    %v462 = vpop.f32.mrb[0].mxu0
    %v463 = vpop.f32.mrb[0].mxu0
    %v464 = vadd.f32 %v327, %v463
    %v465 = vpop.f32.mrb[0].mxu0
    %466 = vmatprep.mubr.bf16.mxu0 0
    %467 = vmatmul.mubr.bf16.gmra.mrb[0].mxu0 %v376
    %v468 = vpop.f32.mrb[0].mxu0
    %v469 = vadd.f32 %v327, %v468
    %v470 = vpop.f32.mrb[0].mxu0
    %v471 = vpop.f32.mrb[0].mxu0
    %v472 = vadd.f32 %v327, %v471
    %v473 = vpop.f32.mrb[0].mxu0
    %474 = vdwg.mxu0
    %v475 = vmul.f32 %v413, 3.0
    %v476 = vmul.f32 %v416, 3.0
    %v477 = vmul.f32 %v421, 3.0
    %v478 = vmul.f32 %v424, 3.0
    %v479 = vmul.f32 %v429, 3.0
    %v480 = vmul.f32 %v432, 3.0
    %v481 = vmul.f32 %v437, 3.0
    %v482 = vmul.f32 %v440, 3.0
    %v483 = vmul.f32 %v445, 3.0
    %v484 = vmul.f32 %v448, 3.0
    %v485 = vmul.f32 %v453, 3.0
    %v486 = vmul.f32 %v456, 3.0
    %v487 = vmul.f32 %v461, 3.0
    %v488 = vmul.f32 %v464, 3.0
    %v489 = vmul.f32 %v469, 3.0
    %v490 = vmul.f32 %v472, 3.0
    %v491 = vtanh.pop %v475
    %v492 = vtanh.pop %v476
    %v493 = vtanh.pop %v477
    %v494 = vtanh.pop %v478
    %v495 = vtanh.pop %v479
    %v496 = vtanh.pop %v480
    %v497 = vtanh.pop %v481
    %v498 = vtanh.pop %v482
    %v499 = vtanh.pop %v483
    %v500 = vtanh.pop %v484
    %v501 = vtanh.pop %v485
    %v502 = vtanh.pop %v486
    %v503 = vtanh.pop %v487
    %v504 = vtanh.pop %v488
    %v505 = vtanh.pop %v489
    %v506 = vtanh.pop %v490
    %v507 = vpack.c.bf16 %v492, %v491
    %v508 = vpack.c.bf16 %v494, %v493
    %v509 = vpack.c.bf16 %v496, %v495
    %v510 = vpack.c.bf16 %v498, %v497
    %v511 = vpack.c.bf16 %v500, %v499
    %v512 = vpack.c.bf16 %v502, %v501
    %v513 = vpack.c.bf16 %v504, %v503
    %v514 = vpack.c.bf16 %v506, %v505
    %523 = vrot.lane.b32.xlu0 %v507, 96
    %v524 = vpop.permute.xlu0 %523
    %525 = vrot.lane.b32.xlu0 %v508, 96
    %v526 = vpop.permute.xlu0 %525
    %527 = vrot.lane.b32.xlu0 %v509, 96
    %v528 = vpop.permute.xlu0 %527
    %529 = vrot.lane.b32.xlu0 %v510, 96
    %v530 = vpop.permute.xlu0 %529
    %531 = vrot.lane.b32.xlu0 %v511, 96
    %v532 = vpop.permute.xlu0 %531
    %533 = vrot.lane.b32.xlu0 %v512, 96
    %v534 = vpop.permute.xlu0 %533
    %535 = vrot.lane.b32.xlu0 %v513, 96
    %v536 = vpop.permute.xlu0 %535
    %537 = vrot.lane.b32.xlu0 %v514, 96
    %v538 = vpop.permute.xlu0 %537
    %vm539 = vcmask 261120
    %v541 = vsel %vm539, %v507, 0
    %v544 = vsel %vm539, %v508, 0
    %v547 = vsel %vm539, %v509, 0
    %v550 = vsel %vm539, %v510, 0
    %v553 = vsel %vm539, %v511, 0
    %v556 = vsel %vm539, %v512, 0
    %v559 = vsel %vm539, %v513, 0
    %v562 = vsel %vm539, %v514, 0
    %v565 = vsel %vm539, %v524, 0
    %v568 = vsel %vm539, %v526, 0
    %v571 = vsel %vm539, %v528, 0
    %v574 = vsel %vm539, %v530, 0
    %v577 = vsel %vm539, %v532, 0
    %v580 = vsel %vm539, %v534, 0
    %v583 = vsel %vm539, %v536, 0
    %v586 = vsel %vm539, %v538, 0
    %588 = vmatprep.subr.bf16.mxu0 0
    %589 = vmatpush1.bf16.xpose.msra.mxu0 %v565
    %590 = vmatprep.subr.bf16.mxu0 0
    %591 = vmatpush1.bf16.xpose.msra.mxu0 %v568
    %592 = vmatprep.subr.bf16.mxu0 0
    %593 = vmatpush1.bf16.xpose.msra.mxu0 %v571
    %594 = vmatprep.subr.bf16.mxu0 0
    %595 = vmatpush1.bf16.xpose.msra.mxu0 %v574
    %596 = vmatprep.subr.bf16.mxu0 0
    %597 = vmatpush1.bf16.xpose.msra.mxu0 %v577
    %598 = vmatprep.subr.bf16.mxu0 0
    %599 = vmatpush1.bf16.xpose.msra.mxu0 %v580
    %600 = vmatprep.subr.bf16.mxu0 0
    %601 = vmatpush1.bf16.xpose.msra.mxu0 %v583
    %602 = vmatprep.subr.bf16.mxu0 0
    %603 = vmatpush1.bf16.xpose.msra.mxu0 %v586
    %604 = vmatprep.subr.bf16.mxu0 0
    %605 = vmatpush1.bf16.xpose.msra.mxu0 0
    %606 = vmatprep.subr.bf16.mxu0 0
    %607 = vmatpush1.bf16.xpose.msra.mxu0 0
    %608 = vmatprep.subr.bf16.mxu0 0
    %609 = vmatpush1.bf16.xpose.msra.mxu0 0
    %610 = vmatprep.subr.bf16.mxu0 0
    %611 = vmatpush1.bf16.xpose.msra.mxu0 0
    %612 = vmatprep.subr.bf16.mxu0 0
    %613 = vmatpush1.bf16.xpose.msra.mxu0 0
    %614 = vmatprep.subr.bf16.mxu0 0
    %615 = vmatpush1.bf16.xpose.msra.mxu0 0
    %616 = vmatprep.subr.bf16.mxu0 0
    %617 = vmatpush1.bf16.xpose.msra.mxu0 0
    %618 = vmatprep.subr.bf16.mxu0 0
    %619 = vmatpush1.bf16.xpose.msra.mxu0 0
    %620 = vmatprep.mubr.bf16.mxu0 0
    %621 = vmatmul.mubr.bf16.gmra.mrb[0].mxu0 %v541
    %v622 = vpop.f32.mrb[0].mxu0
    %v623 = vadd.f32 0.0, %v622
    %v624 = vpop.f32.mrb[0].mxu0
    %v625 = vpop.f32.mrb[0].mxu0
    %v626 = vadd.f32 0.0, %v625
    %v627 = vpop.f32.mrb[0].mxu0
    %628 = vmatprep.mubr.bf16.mxu0 0
    %629 = vmatmul.mubr.bf16.gmra.mrb[0].mxu0 %v544
    %v630 = vpop.f32.mrb[0].mxu0
    %v631 = vadd.f32 0.0, %v630
    %v632 = vpop.f32.mrb[0].mxu0
    %v633 = vpop.f32.mrb[0].mxu0
    %v634 = vadd.f32 0.0, %v633
    %v635 = vpop.f32.mrb[0].mxu0
    %636 = vmatprep.mubr.bf16.mxu0 0
    %637 = vmatmul.mubr.bf16.gmra.mrb[0].mxu0 %v547
    %v638 = vpop.f32.mrb[0].mxu0
    %v639 = vadd.f32 0.0, %v638
    %v640 = vpop.f32.mrb[0].mxu0
    %v641 = vpop.f32.mrb[0].mxu0
    %v642 = vadd.f32 0.0, %v641
    %v643 = vpop.f32.mrb[0].mxu0
    %644 = vmatprep.mubr.bf16.mxu0 0
    %645 = vmatmul.mubr.bf16.gmra.mrb[0].mxu0 %v550
    %v646 = vpop.f32.mrb[0].mxu0
    %v647 = vadd.f32 0.0, %v646
    %v648 = vpop.f32.mrb[0].mxu0
    %v649 = vpop.f32.mrb[0].mxu0
    %v650 = vadd.f32 0.0, %v649
    %v651 = vpop.f32.mrb[0].mxu0
    %652 = vmatprep.mubr.bf16.mxu0 0
    %653 = vmatmul.mubr.bf16.gmra.mrb[0].mxu0 %v553
    %v654 = vpop.f32.mrb[0].mxu0
    %v655 = vadd.f32 0.0, %v654
    %v656 = vpop.f32.mrb[0].mxu0
    %v657 = vpop.f32.mrb[0].mxu0
    %v658 = vadd.f32 0.0, %v657
    %v659 = vpop.f32.mrb[0].mxu0
    %660 = vmatprep.mubr.bf16.mxu0 0
    %661 = vmatmul.mubr.bf16.gmra.mrb[0].mxu0 %v556
    %v662 = vpop.f32.mrb[0].mxu0
    %v663 = vadd.f32 0.0, %v662
    %v664 = vpop.f32.mrb[0].mxu0
    %v665 = vpop.f32.mrb[0].mxu0
    %v666 = vadd.f32 0.0, %v665
    %v667 = vpop.f32.mrb[0].mxu0
    %668 = vmatprep.mubr.bf16.mxu0 0
    %669 = vmatmul.mubr.bf16.gmra.mrb[0].mxu0 %v559
    %v670 = vpop.f32.mrb[0].mxu0
    %v671 = vadd.f32 0.0, %v670
    %v672 = vpop.f32.mrb[0].mxu0
    %v673 = vpop.f32.mrb[0].mxu0
    %v674 = vadd.f32 0.0, %v673
    %v675 = vpop.f32.mrb[0].mxu0
    %676 = vmatprep.mubr.bf16.mxu0 0
    %677 = vmatmul.mubr.bf16.gmra.mrb[0].mxu0 %v562
    %v678 = vpop.f32.mrb[0].mxu0
    %v679 = vadd.f32 0.0, %v678
    %v680 = vpop.f32.mrb[0].mxu0
    %v681 = vpop.f32.mrb[0].mxu0
    %v682 = vadd.f32 0.0, %v681
    %v683 = vpop.f32.mrb[0].mxu0
    %684 = vdwg.mxu0
    %685 = vxpose.xlu0.b32.start [1/16] %v623, 128
    %686 = vxpose.xlu0.b32.cont [2/16] %v626, 128
    %687 = vxpose.xlu0.b32.cont [3/16] %v631, 128
    %688 = vxpose.xlu0.b32.cont [4/16] %v634, 128
    %689 = vxpose.xlu0.b32.cont [5/16] %v639, 128
    %690 = vxpose.xlu0.b32.cont [6/16] %v642, 128
    %691 = vxpose.xlu0.b32.cont [7/16] %v647, 128
    %692 = vxpose.xlu0.b32.cont [8/16] %v650, 128
    %693 = vxpose.xlu0.b32.cont [9/16] %v655, 128
    %694 = vxpose.xlu0.b32.cont [10/16] %v658, 128
    %695 = vxpose.xlu0.b32.cont [11/16] %v663, 128
    %696 = vxpose.xlu0.b32.cont [12/16] %v666, 128
    %697 = vxpose.xlu0.b32.cont [13/16] %v671, 128
    %698 = vxpose.xlu0.b32.cont [14/16] %v674, 128
    %699 = vxpose.xlu0.b32.cont [15/16] %v679, 128
    %700 = vxpose.xlu0.b32.end [16/16] %v682, 128
    %v701 = vpop.trf.xlu0
    %v702 = vpop.trf.xlu0
    %v703 = vpop.trf.xlu0
    %v704 = vpop.trf.xlu0
    %v705 = vpop.trf.xlu0
    %v706 = vpop.trf.xlu0
    %v707 = vpop.trf.xlu0
    %v708 = vpop.trf.xlu0
    %v709 = vpop.trf.xlu0
    %v710 = vpop.trf.xlu0
    %v711 = vpop.trf.xlu0
    %v712 = vpop.trf.xlu0
    %v713 = vpop.trf.xlu0
    %v714 = vpop.trf.xlu0
    %v715 = vpop.trf.xlu0
    %v716 = vpop.trf.xlu0
    %v717 = vsub.f32 %v623, %v701
    %v718 = vsub.f32 %v626, %v702
    %v719 = vsub.f32 %v631, %v703
    %v720 = vsub.f32 %v634, %v704
    %v721 = vsub.f32 %v639, %v705
    %v722 = vsub.f32 %v642, %v706
    %v723 = vsub.f32 %v647, %v707
    %v724 = vsub.f32 %v650, %v708
    %v725 = vsub.f32 %v655, %v709
    %v726 = vsub.f32 %v658, %v710
    %v727 = vsub.f32 %v663, %v711
    %v728 = vsub.f32 %v666, %v712
    %v729 = vsub.f32 %v671, %v713
    %v730 = vsub.f32 %v674, %v714
    %v731 = vsub.f32 %v679, %v715
    %v732 = vsub.f32 %v682, %v716
    %v733 = vmul.f32 %v717, 1.5
    %v734 = vmul.f32 %v718, 1.5
    %v735 = vmul.f32 %v719, 1.5
    %v736 = vmul.f32 %v720, 1.5
    %v737 = vmul.f32 %v721, 1.5
    %v738 = vmul.f32 %v722, 1.5
    %v739 = vmul.f32 %v723, 1.5
    %v740 = vmul.f32 %v724, 1.5
    %v741 = vmul.f32 %v725, 1.5
    %v742 = vmul.f32 %v726, 1.5
    %v743 = vmul.f32 %v727, 1.5
    %v744 = vmul.f32 %v728, 1.5
    %v745 = vmul.f32 %v729, 1.5
    %v746 = vmul.f32 %v730, 1.5
    %v747 = vmul.f32 %v731, 1.5
    %v748 = vmul.f32 %v732, 1.5
    %v749 = vtanh.pop %v733
    %v750 = vtanh.pop %v734
    %v751 = vtanh.pop %v735
    %v752 = vtanh.pop %v736
    %v753 = vtanh.pop %v737
    %v754 = vtanh.pop %v738
    %v755 = vtanh.pop %v739
    %v756 = vtanh.pop %v740
    %v757 = vtanh.pop %v741
    %v758 = vtanh.pop %v742
    %v759 = vtanh.pop %v743
    %v760 = vtanh.pop %v744
    %v761 = vtanh.pop %v745
    %v762 = vtanh.pop %v746
    %v763 = vtanh.pop %v747
    %v764 = vtanh.pop %v748
    %v765 = vadd.f32 %v749, 1.0
    %v766 = vadd.f32 %v750, 1.0
    %v767 = vadd.f32 %v751, 1.0
    %v768 = vadd.f32 %v752, 1.0
    %v769 = vadd.f32 %v753, 1.0
    %v770 = vadd.f32 %v754, 1.0
    %v771 = vadd.f32 %v755, 1.0
    %v772 = vadd.f32 %v756, 1.0
    %v773 = vadd.f32 %v757, 1.0
    %v774 = vadd.f32 %v758, 1.0
    %v775 = vadd.f32 %v759, 1.0
    %v776 = vadd.f32 %v760, 1.0
    %v777 = vadd.f32 %v761, 1.0
    %v778 = vadd.f32 %v762, 1.0
    %v779 = vadd.f32 %v763, 1.0
    %v780 = vadd.f32 %v764, 1.0
    %v781 = vmul.f32 %v765, 0.5
    %v782 = vmul.f32 %v766, 0.5
    %v783 = vmul.f32 %v767, 0.5
    %v784 = vmul.f32 %v768, 0.5
    %v785 = vmul.f32 %v769, 0.5
    %v786 = vmul.f32 %v770, 0.5
    %v787 = vmul.f32 %v771, 0.5
    %v788 = vmul.f32 %v772, 0.5
    %v789 = vmul.f32 %v773, 0.5
    %v790 = vmul.f32 %v774, 0.5
    %v791 = vmul.f32 %v775, 0.5
    %v792 = vmul.f32 %v776, 0.5
    %v793 = vmul.f32 %v777, 0.5
    %v794 = vmul.f32 %v778, 0.5
    %v795 = vmul.f32 %v779, 0.5
    %v796 = vmul.f32 %v780, 0.5
    %s797 = sld [smem:[#allocation2]]
    %v798 = vstv %s797
    %vm799 = vcmp.lt.f32.partialorder %v781, %v798
    %vm800 = vcmp.lt.f32.partialorder %v782, %v798
    %vm801 = vcmp.lt.f32.partialorder %v783, %v798
    %vm802 = vcmp.lt.f32.partialorder %v784, %v798
    %vm803 = vcmp.lt.f32.partialorder %v785, %v798
    %vm804 = vcmp.lt.f32.partialorder %v786, %v798
    %vm805 = vcmp.lt.f32.partialorder %v787, %v798
    %vm806 = vcmp.lt.f32.partialorder %v788, %v798
    %vm807 = vcmp.lt.f32.partialorder %v789, %v798
    %vm808 = vcmp.lt.f32.partialorder %v790, %v798
    %vm809 = vcmp.lt.f32.partialorder %v791, %v798
    %vm810 = vcmp.lt.f32.partialorder %v792, %v798
    %vm811 = vcmp.lt.f32.partialorder %v793, %v798
    %vm812 = vcmp.lt.f32.partialorder %v794, %v798
    %vm813 = vcmp.lt.f32.partialorder %v795, %v798
    %vm814 = vcmp.lt.f32.partialorder %v796, %v798
    %v815 = vsel %vm799, 0.0, %v781
    %v816 = vsel %vm800, 0.0, %v782
    %v817 = vsel %vm801, 0.0, %v783
    %v818 = vsel %vm802, 0.0, %v784
    %v819 = vsel %vm803, 0.0, %v785
    %v820 = vsel %vm804, 0.0, %v786
    %v821 = vsel %vm805, 0.0, %v787
    %v822 = vsel %vm806, 0.0, %v788
    %v823 = vsel %vm807, 0.0, %v789
    %v824 = vsel %vm808, 0.0, %v790
    %v825 = vsel %vm809, 0.0, %v791
    %v826 = vsel %vm810, 0.0, %v792
    %v827 = vsel %vm811, 0.0, %v793
    %v828 = vsel %vm812, 0.0, %v794
    %v829 = vsel %vm813, 0.0, %v795
    %v830 = vsel %vm814, 0.0, %v796
    %831 = vst [vmem:[#allocation3] sm:$0xff] %v815
    %832 = vst [vmem:[#allocation3 + $0x8] sm:$0xff] %v816
    %833 = vst [vmem:[#allocation3 + $0x10] sm:$0xff] %v817
    %834 = vst [vmem:[#allocation3 + $0x18] sm:$0xff] %v818
    %835 = vst [vmem:[#allocation3 + $0x20] sm:$0xff] %v819
    %836 = vst [vmem:[#allocation3 + $0x28] sm:$0xff] %v820
    %837 = vst [vmem:[#allocation3 + $0x30] sm:$0xff] %v821
    %838 = vst [vmem:[#allocation3 + $0x38] sm:$0xff] %v822
    %839 = vst [vmem:[#allocation3 + $0x40] sm:$0xff] %v823
    %840 = vst [vmem:[#allocation3 + $0x48] sm:$0xff] %v824
    %841 = vst [vmem:[#allocation3 + $0x50] sm:$0xff] %v825
    %842 = vst [vmem:[#allocation3 + $0x58] sm:$0xff] %v826
    %843 = vst [vmem:[#allocation3 + $0x60] sm:$0xff] %v827
    %844 = vst [vmem:[#allocation3 + $0x68] sm:$0xff] %v828
    %845 = vst [vmem:[#allocation3 + $0x70] sm:$0xff] %v829
    %846 = vst [vmem:[#allocation3 + $0x78] sm:$0xff] %v830
    // Predicated region
    $region22: #{tpu_custom_call.1} parent=1 // pred_check
      _
    $region23: #{tpu_custom_call.1} parent=1 // pred_check_branch
      %848 = sbr.rel (0) target = $region25
    $region24: #{tpu_custom_call.1} parent=1 // pred_region
      %s850 = ssub.s32 2048, 2048
      %851 = vsyncadd [#allocation4], %s850
      %s852 = sshll.u32 [#allocation3], 4
      %s853 = int_to_ptr.vmem [resolvable:$true] %s852
      %858 = dma.vmem_to_hbm [thread:$0]  %s853, 2048, %s5, [#allocation4], 128, 128, 8
    $region25: #{tpu_custom_call.1} parent=1 // pred_fallthru
      _
    // Predicated region
    $region26: #{tpu_custom_call.1} parent=1 // pred_check
      _
    $region27: #{tpu_custom_call.1} parent=1 // pred_check_branch
      %860 = sbr.rel (0) target = $region29
    $region28: #{tpu_custom_call.1} parent=1 // pred_region
      %861 = dma.done [#allocation4], 2048
    $region29: #{tpu_custom_call.1} parent=1 // pred_fallthru
      _
    %862 = vsyncpa [#allocation4], 1

</llo_original>
